<compile_context>
chip_gen: v7x
topology: tpu7x:2x2x1
jax: 0.10.0
libtpu: 0.0.40
codegen_flags: <defaults>
</compile_context>

<pallas_src>
import jax
import jax.numpy as jnp
from jax.experimental import pallas as pl
from jax.experimental.pallas import tpu as pltpu

_MIB = 1024 * 1024


def _round_up(v, m):
    return (v + m - 1) // m * m


def _pick_tile(hw_pad, avail_bytes, per_col_bytes, cap=8192):
    """Largest multiple of 128 that divides hw_pad and fits the byte budget/cap."""
    t_max = max(avail_bytes // max(per_col_bytes, 1), 128)
    t_max = min(int(t_max), cap, hw_pad)
    t_max = max((t_max // 128) * 128, 128)
    t = t_max
    while t > 128:
        if hw_pad % t == 0:
            return t
        t -= 128
    return 128   # hw_pad is always a multiple of 128


# ---------------------------------------------------------------------------
# Fused single pass: pooled-sum reduction + refine + residual + ReLU + scale
# ---------------------------------------------------------------------------
def _make_fused_kernel(tile_hw, n_tiles, inv_hw):
    def kernel(x_ref, y_ref, wrx_ref, wry_ref, wax_ref, way_ref, ba_ref,
               o_ref, accx, accy):
        t = pl.program_id(1)

        @pl.when(t == 0)
        def _init():
            accx[...] = jnp.zeros_like(accx)
            accy[...] = jnp.zeros_like(accy)

        xv = x_ref[0]                                   # (C, T) lane-dense
        yv = y_ref[0]

        # Pooled-sum accumulation on the MXU (ones-vector matmul): the MXU slot
        # has slack in this bandwidth-bound kernel, so no cross-lane XLU reduce
        # sits on the per-step critical path.
        ones = jnp.ones((tile_hw, 1), dtype=xv.dtype)
        accx[...] += jnp.dot(xv, ones, preferred_element_type=jnp.float32)
        accy[...] += jnp.dot(yv, ones, preferred_element_type=jnp.float32)

        # refine(cat) = Wr_x @ x + Wr_y @ y   (concat removed via weight split)
        refined = (jnp.dot(wrx_ref[...], xv, preferred_element_type=jnp.float32)
                   + jnp.dot(wry_ref[...], yv, preferred_element_type=jnp.float32))
        out_t = jnp.maximum(refined + xv.astype(jnp.float32), 0.0)

        # Write the UNSCALED tile into the VMEM-resident full-image output block.
        col = pl.multiple_of(t * tile_hw, 128)
        o_ref[0, :, pl.ds(col, tile_hw)] = out_t.astype(o_ref.dtype)

        @pl.when(t == n_tiles - 1)
        def _finalize():
            px = accx[...] * inv_hw                     # (C, 1) pooled mean (x half)
            py = accy[...] * inv_hw                     # (C, 1) pooled mean (y half)
            att = (jnp.dot(wax_ref[...], px, preferred_element_type=jnp.float32)
                   + jnp.dot(way_ref[...], py, preferred_element_type=jnp.float32)
                   + ba_ref[...].astype(jnp.float32))
            scale = 1.0 + att                           # (C, 1)

            # Rescale the resident output block in place, chunk by chunk, so the
            # f32 temporary stays bounded to (C, tile_hw).
            @pl.loop(0, n_tiles)
            def _rescale(i):
                c0 = pl.multiple_of(i * tile_hw, 128)
                blk = o_ref[0, :, pl.ds(c0, tile_hw)].astype(jnp.float32)
                o_ref[0, :, pl.ds(c0, tile_hw)] = (scale * blk).astype(o_ref.dtype)

    return kernel


# ---------------------------------------------------------------------------
# Two-pass fallback (used when one image's output cannot stay VMEM-resident)
# ---------------------------------------------------------------------------
def _make_pool_kernel(tile_hw, n_tiles):
    """Pure-bandwidth reduction: pooled per-channel sums of x and y per image."""
    def kernel(x_ref, y_ref, sx_ref, sy_ref, accx, accy):
        t = pl.program_id(1)

        @pl.when(t == 0)
        def _init():
            accx[...] = jnp.zeros_like(accx)
            accy[...] = jnp.zeros_like(accy)

        xv = x_ref[0]
        yv = y_ref[0]
        ones = jnp.ones((tile_hw, 1), dtype=xv.dtype)
        accx[...] += jnp.dot(xv, ones, preferred_element_type=jnp.float32)
        accy[...] += jnp.dot(yv, ones, preferred_element_type=jnp.float32)

        @pl.when(t == n_tiles - 1)
        def _finalize():
            sx_ref[0] = accx[...]
            sy_ref[0] = accy[...]

    return kernel


def _fusion_scale_kernel(x_ref, y_ref, wrx_ref, wry_ref, att_ref, o_ref):
    """out = (1 + att) * relu(Wr_x @ x + Wr_y @ y + x) on one (C, T) tile."""
    xv = x_ref[0]
    yv = y_ref[0]
    refined = (jnp.dot(wrx_ref[...], xv, preferred_element_type=jnp.float32)
               + jnp.dot(wry_ref[...], yv, preferred_element_type=jnp.float32))
    out = jnp.maximum(refined + xv.astype(jnp.float32), 0.0)
    o_ref[0] = (att_ref[0] * out).astype(o_ref.dtype)


# ---------------------------------------------------------------------------
# Wrapper
# ---------------------------------------------------------------------------
def fusion_pallas(x_nchw, y_nchw, w_refine, w_att, b_att, *,
                  vmem_budget_bytes=48 * _MIB):
    """Fusion.forward.  x_nchw, y_nchw: (N, C, H, W); w_refine, w_att: (C, 2C);
    b_att: (C,).  vmem_budget_bytes caps VMEM use (48 MiB default leaves headroom
    under v7x's 64 MiB physical VMEM; raise it on v6e/v5e for larger tiles)."""
    N, C, H, W = x_nchw.shape
    HW = H * W
    dtype = x_nchw.dtype
    itemsize = dtype.itemsize
    w_itemsize = w_refine.dtype.itemsize

    # Sublane-aligned channels, lane-aligned (multiple-of-128) spatial axis.
    sub = {4: 8, 2: 16, 1: 32}.get(itemsize, 8)
    Cp = _round_up(C, sub)
    HWp = _round_up(HW, 128)

    # Free views NCHW -> (N, C, HW); 1x1 convs become (C, C) @ (C, HW) matmuls.
    x = x_nchw.reshape(N, C, HW)
    y = y_nchw.reshape(N, C, HW)
    if Cp != C or HWp != HW:
        pad = ((0, 0), (0, Cp - C), (0, HWp - HW))
        x = jnp.pad(x, pad)
        y = jnp.pad(y, pad)

    # Split the 2C->C weights along input channels (removes the concat) and pad.
    def pad_w(w):
        return jnp.pad(w, ((0, Cp - C), (0, Cp - C)))

    wr_x, wr_y = pad_w(w_refine[:, :C]), pad_w(w_refine[:, C:])
    wa_x, wa_y = pad_w(w_att[:, :C]), pad_w(w_att[:, C:])
    ba = jnp.pad(b_att, (0, Cp - C)).reshape(Cp, 1)

    inv_hw = 1.0 / float(HW)

    # ---- explicit VMEM budget ----------------------------------------------
    weight_bytes = 2 * (4 * Cp * Cp + Cp * 128) * w_itemsize  # double-buffered
    slack = 2 * _MIB                                          # scratch + misc
    vmem_limit = int(min(vmem_budget_bytes + 8 * _MIB, 112 * _MIB))

    # Fused path fixed cost: VMEM-resident per-image output block (2 buffers).
    fused_fixed = 2 * Cp * HWp * itemsize + weight_bytes + slack
    # Per-HW-column streaming cost: x/y tiles double-buffered + f32 temporaries.
    fused_per_col = Cp * (4 * itemsize + 16)
    use_fused = fused_fixed + 128 * fused_per_col <= vmem_budget_bytes

    if use_fused:
        T = _pick_tile(HWp, vmem_budget_bytes - fused_fixed, fused_per_col)
        n_tiles = HWp // T
        out = pl.pallas_call(
            _make_fused_kernel(T, n_tiles, inv_hw),
            out_shape=jax.ShapeDtypeStruct((N, Cp, HWp), dtype),
            grid=(N, n_tiles),
            in_specs=[
                pl.BlockSpec((1, Cp, T), lambda n, t: (n, 0, t)),
                pl.BlockSpec((1, Cp, T), lambda n, t: (n, 0, t)),
                pl.BlockSpec((Cp, Cp), lambda n, t: (0, 0)),
                pl.BlockSpec((Cp, Cp), lambda n, t: (0, 0)),
                pl.BlockSpec((Cp, Cp), lambda n, t: (0, 0)),
                pl.BlockSpec((Cp, Cp), lambda n, t: (0, 0)),
                pl.BlockSpec((Cp, 1), lambda n, t: (0, 0)),
            ],
            out_specs=pl.BlockSpec((1, Cp, HWp), lambda n, t: (n, 0, 0)),
            scratch_shapes=[pltpu.VMEM((Cp, 1), jnp.float32),
                            pltpu.VMEM((Cp, 1), jnp.float32)],
            compiler_params=pltpu.CompilerParams(
                dimension_semantics=("parallel", "arbitrary"),
                vmem_limit_bytes=vmem_limit),
        )(x, y, wr_x, wr_y, wa_x, wa_y, ba)
    else:
        # ---- two-pass fallback ----------------------------------------------
        two_per_col = Cp * (6 * itemsize + 12)
        T = _pick_tile(HWp, vmem_budget_bytes - weight_bytes - slack, two_per_col)
        n_tiles = HWp // T

        # Pass 1: pooled channel sums only; the tiny attention matmul is done
        # in plain JAX below (keeps the reduction a pure bandwidth pass).
        sums_x, sums_y = pl.pallas_call(
            _make_pool_kernel(T, n_tiles),
            out_shape=(jax.ShapeDtypeStruct((N, Cp, 1), jnp.float32),
                       jax.ShapeDtypeStruct((N, Cp, 1), jnp.float32)),
            grid=(N, n_tiles),
            in_specs=[
                pl.BlockSpec((1, Cp, T), lambda n, t: (n, 0, t)),
                pl.BlockSpec((1, Cp, T), lambda n, t: (n, 0, t)),
            ],
            out_specs=(pl.BlockSpec((1, Cp, 1), lambda n, t: (n, 0, 0)),
                       pl.BlockSpec((1, Cp, 1), lambda n, t: (n, 0, 0))),
            scratch_shapes=[pltpu.VMEM((Cp, 1), jnp.float32),
                            pltpu.VMEM((Cp, 1), jnp.float32)],
            compiler_params=pltpu.CompilerParams(
                dimension_semantics=("parallel", "arbitrary"),
                vmem_limit_bytes=vmem_limit),
        )(x, y)

        mean_x = sums_x[..., 0] * inv_hw                     # (N, Cp)
        mean_y = sums_y[..., 0] * inv_hw
        att = mean_x @ wa_x.T + mean_y @ wa_y.T + ba[:, 0]   # (N, Cp)
        att_plus1 = (1.0 + att).astype(jnp.float32).reshape(N, Cp, 1)

        # Pass 2: fused refine + residual + ReLU + attention scale.
        out = pl.pallas_call(
            _fusion_scale_kernel,
            out_shape=jax.ShapeDtypeStruct((N, Cp, HWp), dtype),
            grid=(N, n_tiles),
            in_specs=[
                pl.BlockSpec((1, Cp, T), lambda n, t: (n, 0, t)),
                pl.BlockSpec((1, Cp, T), lambda n, t: (n, 0, t)),
                pl.BlockSpec((Cp, Cp), lambda n, t: (0, 0)),
                pl.BlockSpec((Cp, Cp), lambda n, t: (0, 0)),
                pl.BlockSpec((1, Cp, 1), lambda n, t: (n, 0, 0)),
            ],
            out_specs=pl.BlockSpec((1, Cp, T), lambda n, t: (n, 0, t)),
            compiler_params=pltpu.CompilerParams(
                dimension_semantics=("parallel", "parallel"),
                vmem_limit_bytes=vmem_limit),
        )(x, y, wr_x, wr_y, att_plus1)

    # Strip channel / spatial padding; free view back to NCHW.
    return out[:, :C, :HW].reshape(N, C, H, W)


def fusion_reference(x, y, w_refine, w_att, b_att):
    """Pure-JAX NCHW reference matching the PyTorch semantics."""
    cat = jnp.concatenate([x, y], axis=1)                          # (N, 2C, H, W)
    refined = jnp.einsum('oc,nchw->nohw', w_refine, cat, precision='highest')
    out = jnp.maximum(refined + x, 0.0)
    pooled = jnp.mean(cat, axis=(2, 3))                            # (N, 2C)
    att = jnp.einsum('nc,oc->no', pooled, w_att, precision='highest') + b_att
    return (1.0 + att)[:, :, None, None] * out


if __name__ == "__main__":
    N, C, H, W = 2, 4, 16, 16

    key = jax.random.PRNGKey(0)
    kx, ky, kwr, kwa, kba = jax.random.split(key, 5)

    x = jax.random.normal(kx, (N, C, H, W), dtype=jnp.float32)
    y = jax.random.normal(ky, (N, C, H, W), dtype=jnp.float32)

    # Parameters:
    #   refine:    Conv2d(2C, C, 1, bias=False) -> weight (C, 2C)
    #   attention: Conv2d(2C, C, 1, bias=True)  -> weight (C, 2C), bias (C,)
    w_refine = jax.random.normal(kwr, (C, 2 * C), dtype=jnp.float32) * 0.1
    w_att = jax.random.normal(kwa, (C, 2 * C), dtype=jnp.float32) * 0.1
    b_att = jax.random.normal(kba, (C,), dtype=jnp.float32) * 0.1

    ref = fusion_reference(x, y, w_refine, w_att, b_att)

    # Fused single-pass path (default VMEM budget).
    out = jax.block_until_ready(fusion_pallas(x, y, w_refine, w_att, b_att))
    assert out.shape == (N, C, H, W)
    assert jnp.allclose(out, ref, atol=1e-2, rtol=1e-2), "fused path mismatch"

    # Two-pass fallback path (forced by an artificially tiny VMEM budget).
    out2 = jax.block_until_ready(
        fusion_pallas(x, y, w_refine, w_att, b_att, vmem_budget_bytes=1 * _MIB))
    assert jnp.allclose(out2, ref, atol=1e-2, rtol=1e-2), "fallback path mismatch"

    print("KERNEL_OK")
</pallas_src>

<mosaic_0001>
module attributes {stable_mosaic.version = 11 : i64} {
  func.func @kernel(%arg0: i32, %arg1: i32, %arg2: memref<1x8x256xf32, #tpu.memory_space<vmem>>, %arg3: memref<1x8x256xf32, #tpu.memory_space<vmem>>, %arg4: memref<8x8xf32, #tpu.memory_space<vmem>>, %arg5: memref<8x8xf32, #tpu.memory_space<vmem>>, %arg6: memref<8x8xf32, #tpu.memory_space<vmem>>, %arg7: memref<8x8xf32, #tpu.memory_space<vmem>>, %arg8: memref<8x1xf32, #tpu.memory_space<vmem>>, %arg9: memref<1x8x256xf32, #tpu.memory_space<vmem>>, %arg10: memref<8x1xf32, #tpu.memory_space<vmem>>, %arg11: memref<8x1xf32, #tpu.memory_space<vmem>>) attributes {dimension_semantics = [#tpu.dimension_semantics<parallel>, #tpu.dimension_semantics<arbitrary>], iteration_bounds = array<i64: 2, 1>, scalar_prefetch = 0 : i64, scratch_operands = 2 : i64, tpu.core_type = #tpu.core_type<tc>, window_params = [{transform_indices = @transform_0, window_bounds = array<i64: 1, 8, 256>}, {transform_indices = @transform_1, window_bounds = array<i64: 1, 8, 256>}, {pipeline_mode = #tpu.pipeline_mode<synchronous>, transform_indices = @transform_2, window_bounds = array<i64: 8, 8>}, {pipeline_mode = #tpu.pipeline_mode<synchronous>, transform_indices = @transform_3, window_bounds = array<i64: 8, 8>}, {pipeline_mode = #tpu.pipeline_mode<synchronous>, transform_indices = @transform_4, window_bounds = array<i64: 8, 8>}, {pipeline_mode = #tpu.pipeline_mode<synchronous>, transform_indices = @transform_5, window_bounds = array<i64: 8, 8>}, {pipeline_mode = #tpu.pipeline_mode<synchronous>, transform_indices = @transform_6, window_bounds = array<i64: 8, 1>}, {transform_indices = @transform_7, window_bounds = array<i64: 1, 8, 256>}]} {
    %c0_i32 = arith.constant 0 : i32
    %0 = arith.cmpi eq, %arg1, %c0_i32 : i32
    %1 = arith.extui %0 : i1 to i32
    %c0_i32_0 = arith.constant 0 : i32
    %2 = arith.cmpi ne, %1, %c0_i32_0 : i32
    scf.if %2 {
      %cst_27 = arith.constant 0.000000e+00 : f32
      %33 = vector.broadcast %cst_27 : f32 to vector<8x1xf32>
      %c0_28 = arith.constant 0 : index
      %c0_29 = arith.constant 0 : index
      %34 = vector.load %arg10[%c0_28, %c0_29] : memref<8x1xf32, #tpu.memory_space<vmem>>, vector<8x1xf32>
      tpu.vector_store %arg10[%c0_28, %c0_29], %33 {strides = array<i32>} : memref<8x1xf32, #tpu.memory_space<vmem>>, vector<8x1xf32>,
      %cst_30 = arith.constant 0.000000e+00 : f32
      %35 = vector.broadcast %cst_30 : f32 to vector<8x1xf32>
      %c0_31 = arith.constant 0 : index
      %c0_32 = arith.constant 0 : index
      %36 = vector.load %arg11[%c0_31, %c0_32] : memref<8x1xf32, #tpu.memory_space<vmem>>, vector<8x1xf32>
      tpu.vector_store %arg11[%c0_31, %c0_32], %35 {strides = array<i32>} : memref<8x1xf32, #tpu.memory_space<vmem>>, vector<8x1xf32>,
    } else {
    }
    %c0 = arith.constant 0 : index
    %c0_1 = arith.constant 0 : index
    %c0_2 = arith.constant 0 : index
    %3 = vector.load %arg2[%c0, %c0_1, %c0_2] : memref<1x8x256xf32, #tpu.memory_space<vmem>>, vector<1x8x256xf32>
    %4 = vector.shape_cast %3 : vector<1x8x256xf32> to vector<8x256xf32>
    %c0_3 = arith.constant 0 : index
    %c0_4 = arith.constant 0 : index
    %c0_5 = arith.constant 0 : index
    %5 = vector.load %arg3[%c0_3, %c0_4, %c0_5] : memref<1x8x256xf32, #tpu.memory_space<vmem>>, vector<1x8x256xf32>
    %6 = vector.shape_cast %5 : vector<1x8x256xf32> to vector<8x256xf32>
    %cst = arith.constant 1.000000e+00 : f32
    %7 = vector.broadcast %cst : f32 to vector<256x1xf32>
    %c0_6 = arith.constant 0 : index
    %c0_7 = arith.constant 0 : index
    %8 = vector.load %arg10[%c0_6, %c0_7] : memref<8x1xf32, #tpu.memory_space<vmem>>, vector<8x1xf32>
    %cst_8 = arith.constant dense<0.000000e+00> : vector<8x1xf32>
    %9 = tpu.matmul %4, %7, %cst_8 {dimension_numbers = #tpu.dot_dimension_numbers<[1], [0], [0], [1], [0, 0, 1, 1], [], []>} : vector<8x256xf32>, vector<256x1xf32>, vector<8x1xf32> -> vector<8x1xf32>
    %10 = arith.addf %8, %9 : vector<8x1xf32>
    %c0_9 = arith.constant 0 : index
    %c0_10 = arith.constant 0 : index
    %11 = vector.load %arg10[%c0_9, %c0_10] : memref<8x1xf32, #tpu.memory_space<vmem>>, vector<8x1xf32>
    tpu.vector_store %arg10[%c0_9, %c0_10], %10 {strides = array<i32>} : memref<8x1xf32, #tpu.memory_space<vmem>>, vector<8x1xf32>,
    %c0_11 = arith.constant 0 : index
    %c0_12 = arith.constant 0 : index
    %12 = vector.load %arg11[%c0_11, %c0_12] : memref<8x1xf32, #tpu.memory_space<vmem>>, vector<8x1xf32>
    %cst_13 = arith.constant dense<0.000000e+00> : vector<8x1xf32>
    %13 = tpu.matmul %6, %7, %cst_13 {dimension_numbers = #tpu.dot_dimension_numbers<[1], [0], [0], [1], [0, 0, 1, 1], [], []>} : vector<8x256xf32>, vector<256x1xf32>, vector<8x1xf32> -> vector<8x1xf32>
    %14 = arith.addf %12, %13 : vector<8x1xf32>
    %c0_14 = arith.constant 0 : index
    %c0_15 = arith.constant 0 : index
    %15 = vector.load %arg11[%c0_14, %c0_15] : memref<8x1xf32, #tpu.memory_space<vmem>>, vector<8x1xf32>
    tpu.vector_store %arg11[%c0_14, %c0_15], %14 {strides = array<i32>} : memref<8x1xf32, #tpu.memory_space<vmem>>, vector<8x1xf32>,
    %c0_16 = arith.constant 0 : index
    %c0_17 = arith.constant 0 : index
    %16 = vector.load %arg4[%c0_16, %c0_17] : memref<8x8xf32, #tpu.memory_space<vmem>>, vector<8x8xf32>
    %cst_18 = arith.constant dense<0.000000e+00> : vector<8x256xf32>
    %17 = tpu.matmul %16, %4, %cst_18 {dimension_numbers = #tpu.dot_dimension_numbers<[1], [0], [0], [1], [0, 0, 1, 1], [], []>} : vector<8x8xf32>, vector<8x256xf32>, vector<8x256xf32> -> vector<8x256xf32>
    %c0_19 = arith.constant 0 : index
    %c0_20 = arith.constant 0 : index
    %18 = vector.load %arg5[%c0_19, %c0_20] : memref<8x8xf32, #tpu.memory_space<vmem>>, vector<8x8xf32>
    %cst_21 = arith.constant dense<0.000000e+00> : vector<8x256xf32>
    %19 = tpu.matmul %18, %6, %cst_21 {dimension_numbers = #tpu.dot_dimension_numbers<[1], [0], [0], [1], [0, 0, 1, 1], [], []>} : vector<8x8xf32>, vector<8x256xf32>, vector<8x256xf32> -> vector<8x256xf32>
    %20 = arith.addf %17, %19 : vector<8x256xf32>
    %21 = arith.addf %20, %4 : vector<8x256xf32>
    %cst_22 = arith.constant 0.000000e+00 : f32
    %22 = vector.broadcast %cst_22 : f32 to vector<8x256xf32>
    %23 = arith.maximumf %21, %22 : vector<8x256xf32>
    %c256_i32 = arith.constant 256 : i32
    %24 = arith.muli %arg1, %c256_i32 : i32
    %25 = tpu.assume_multiple %24, 128 : i32
    %c0_23 = arith.constant 0 : index
    %c0_24 = arith.constant 0 : index
    %26 = arith.index_cast %25 : i32 to index
    %27 = vector.load %arg9[%c0_23, %c0_24, %26] : memref<1x8x256xf32, #tpu.memory_space<vmem>>, vector<1x8x256xf32>
    %28 = vector.shape_cast %27 : vector<1x8x256xf32> to vector<8x256xf32>
    %29 = vector.shape_cast %23 : vector<8x256xf32> to vector<1x8x256xf32>
    tpu.vector_store %arg9[%c0_23, %c0_24, %26], %29 {strides = array<i32>} : memref<1x8x256xf32, #tpu.memory_space<vmem>>, vector<1x8x256xf32>,
    %c0_i32_25 = arith.constant 0 : i32
    %30 = arith.cmpi eq, %arg1, %c0_i32_25 : i32
    %31 = arith.extui %30 : i1 to i32
    %c0_i32_26 = arith.constant 0 : i32
    %32 = arith.cmpi ne, %31, %c0_i32_26 : i32
    scf.if %32 {
      %c0_27 = arith.constant 0 : index
      %c0_28 = arith.constant 0 : index
      %33 = vector.load %arg10[%c0_27, %c0_28] : memref<8x1xf32, #tpu.memory_space<vmem>>, vector<8x1xf32>
      %cst_29 = arith.constant 3.906250e-03 : f32
      %34 = vector.broadcast %cst_29 : f32 to vector<8x1xf32>
      %35 = arith.mulf %33, %34 : vector<8x1xf32>
      %c0_30 = arith.constant 0 : index
      %c0_31 = arith.constant 0 : index
      %36 = vector.load %arg11[%c0_30, %c0_31] : memref<8x1xf32, #tpu.memory_space<vmem>>, vector<8x1xf32>
      %cst_32 = arith.constant 3.906250e-03 : f32
      %37 = vector.broadcast %cst_32 : f32 to vector<8x1xf32>
      %38 = arith.mulf %36, %37 : vector<8x1xf32>
      %c0_33 = arith.constant 0 : index
      %c0_34 = arith.constant 0 : index
      %39 = vector.load %arg6[%c0_33, %c0_34] : memref<8x8xf32, #tpu.memory_space<vmem>>, vector<8x8xf32>
      %cst_35 = arith.constant dense<0.000000e+00> : vector<8x1xf32>
      %40 = tpu.matmul %39, %35, %cst_35 {dimension_numbers = #tpu.dot_dimension_numbers<[1], [0], [0], [1], [0, 0, 1, 1], [], []>} : vector<8x8xf32>, vector<8x1xf32>, vector<8x1xf32> -> vector<8x1xf32>
      %c0_36 = arith.constant 0 : index
      %c0_37 = arith.constant 0 : index
      %41 = vector.load %arg7[%c0_36, %c0_37] : memref<8x8xf32, #tpu.memory_space<vmem>>, vector<8x8xf32>
      %cst_38 = arith.constant dense<0.000000e+00> : vector<8x1xf32>
      %42 = tpu.matmul %41, %38, %cst_38 {dimension_numbers = #tpu.dot_dimension_numbers<[1], [0], [0], [1], [0, 0, 1, 1], [], []>} : vector<8x8xf32>, vector<8x1xf32>, vector<8x1xf32> -> vector<8x1xf32>
      %43 = arith.addf %40, %42 : vector<8x1xf32>
      %c0_39 = arith.constant 0 : index
      %c0_40 = arith.constant 0 : index
      %44 = vector.load %arg8[%c0_39, %c0_40] : memref<8x1xf32, #tpu.memory_space<vmem>>, vector<8x1xf32>
      %45 = arith.addf %43, %44 : vector<8x1xf32>
      %cst_41 = arith.constant 1.000000e+00 : f32
      %46 = vector.broadcast %cst_41 : f32 to vector<8x1xf32>
      %47 = arith.addf %46, %45 : vector<8x1xf32>
      %c0_i32_42 = arith.constant 0 : i32
      %c1_i32 = arith.constant 1 : i32
      %48 = arith.muli %c0_i32_42, %c1_i32 : i32
      %c0_i32_43 = arith.constant 0 : i32
      %49 = arith.addi %c0_i32_43, %48 : i32
      %c256_i32_44 = arith.constant 256 : i32
      %50 = arith.muli %49, %c256_i32_44 : i32
      %51 = tpu.assume_multiple %50, 128 : i32
      %c0_45 = arith.constant 0 : index
      %c0_46 = arith.constant 0 : index
      %52 = arith.index_cast %51 : i32 to index
      %53 = vector.load %arg9[%c0_45, %c0_46, %52] : memref<1x8x256xf32, #tpu.memory_space<vmem>>, vector<1x8x256xf32>
      %54 = vector.shape_cast %53 : vector<1x8x256xf32> to vector<8x256xf32>
      %55 = vector.broadcast %47 : vector<8x1xf32> to vector<8x256xf32>
      %56 = arith.mulf %55, %54 : vector<8x256xf32>
      %c0_47 = arith.constant 0 : index
      %c0_48 = arith.constant 0 : index
      %57 = arith.index_cast %51 : i32 to index
      %58 = vector.load %arg9[%c0_47, %c0_48, %57] : memref<1x8x256xf32, #tpu.memory_space<vmem>>, vector<1x8x256xf32>
      %59 = vector.shape_cast %58 : vector<1x8x256xf32> to vector<8x256xf32>
      %60 = vector.shape_cast %56 : vector<8x256xf32> to vector<1x8x256xf32>
      tpu.vector_store %arg9[%c0_47, %c0_48, %57], %60 {strides = array<i32>} : memref<1x8x256xf32, #tpu.memory_space<vmem>>, vector<1x8x256xf32>,
      %c1_i32_49 = arith.constant 1 : i32
    } else {
    }
    return
  }
  func.func @transform_0(%arg0: i32, %arg1: i32) -> (i32, i32, i32) {
    %c0_i32 = arith.constant 0 : i32
    %c0_i32_0 = arith.constant 0 : i32
    return %arg0, %c0_i32, %arg1 : i32, i32, i32
  }
  func.func @transform_1(%arg0: i32, %arg1: i32) -> (i32, i32, i32) {
    %c0_i32 = arith.constant 0 : i32
    %c0_i32_0 = arith.constant 0 : i32
    return %arg0, %c0_i32, %arg1 : i32, i32, i32
  }
  func.func @transform_2(%arg0: i32, %arg1: i32) -> (i32, i32) {
    %c0_i32 = arith.constant 0 : i32
    %c0_i32_0 = arith.constant 0 : i32
    %c0_i32_1 = arith.constant 0 : i32
    return %c0_i32, %c0_i32_0 : i32, i32
  }
  func.func @transform_3(%arg0: i32, %arg1: i32) -> (i32, i32) {
    %c0_i32 = arith.constant 0 : i32
    %c0_i32_0 = arith.constant 0 : i32
    %c0_i32_1 = arith.constant 0 : i32
    return %c0_i32, %c0_i32_0 : i32, i32
  }
  func.func @transform_4(%arg0: i32, %arg1: i32) -> (i32, i32) {
    %c0_i32 = arith.constant 0 : i32
    %c0_i32_0 = arith.constant 0 : i32
    %c0_i32_1 = arith.constant 0 : i32
    return %c0_i32, %c0_i32_0 : i32, i32
  }
  func.func @transform_5(%arg0: i32, %arg1: i32) -> (i32, i32) {
    %c0_i32 = arith.constant 0 : i32
    %c0_i32_0 = arith.constant 0 : i32
    %c0_i32_1 = arith.constant 0 : i32
    return %c0_i32, %c0_i32_0 : i32, i32
  }
  func.func @transform_6(%arg0: i32, %arg1: i32) -> (i32, i32) {
    %c0_i32 = arith.constant 0 : i32
    %c0_i32_0 = arith.constant 0 : i32
    %c0_i32_1 = arith.constant 0 : i32
    return %c0_i32, %c0_i32_0 : i32, i32
  }
  func.func @transform_7(%arg0: i32, %arg1: i32) -> (i32, i32, i32) {
    %c0_i32 = arith.constant 0 : i32
    %c0_i32_0 = arith.constant 0 : i32
    %c0_i32_1 = arith.constant 0 : i32
    return %arg0, %c0_i32, %c0_i32_0 : i32, i32, i32
  }
}

</mosaic_0001>

<llo_original>
// kernel: tpu_custom_call.1
$region0: #{tpu_custom_call.1}
  #allocation0 [shape = 'u32[]', space=smem, size = 0x4, offset = 0x4, fixed_abs, tag = 'smem constant byte address 0x4 - core index']
  #allocation1 [shape = 'u32[144,128]{1,0:T(1,128)}', space=vmem, size = 0x12000, scoped, tag = 'internal scratch']
  #allocation2 [shape = 'f32[8,1]{1,0:T(8,128)}', space=vmem, size = 0x1000, scoped, tag = 'scratch operand']
  #allocation3 [shape = 'f32[8,1]{1,0:T(8,128)}', space=vmem, size = 0x1000, scoped, tag = 'scratch operand']
  %s0 = inlined_call_operand.hbm [shape: f32[2,8,256], index: 0, kind: input, shape index: {}]
  %s1 = inlined_call_operand.hbm [shape: f32[2,8,256], index: 1, kind: input, shape index: {}]
  %s2 = inlined_call_operand.vmem [shape: f32[8,8], index: 2, kind: input, shape index: {}]
  %s3 = inlined_call_operand.vmem [shape: f32[8,8], index: 3, kind: input, shape index: {}]
  %s4 = inlined_call_operand.vmem [shape: f32[8,8], index: 4, kind: input, shape index: {}]
  %s5 = inlined_call_operand.hbm [shape: f32[8,8], index: 5, kind: input, shape index: {}]
  %s6 = inlined_call_operand.vmem [shape: f32[8,1], index: 6, kind: input, shape index: {}]
  %s7 = inlined_call_operand.hbm [shape: f32[2,8,256], index: 7, kind: output, shape index: {}]
  %s8 = sld [smem:[#allocation0]]
  $region81: #{tpu_custom_call.1} parent=0
    _
  %s10 = ssub.s32 1, %s8
  %s11 = scalar_select 0, %s10, %s8
  $region1: #{tpu_custom_call.1} parent=0
    #allocation4 [shape = 'u8[16384]{0}', space=vmem, size = 0x4000, scoped, tag = 'input window, operand 0']
    #allocation5 [shape = 's32[2]{0}', space=sflag, size = 0x8, scoped, tag = 'scoped memory for tpu_custom_call.1']
    #allocation6 [shape = 's32[2]{0}', space=sflag, size = 0x8, scoped, tag = 'scoped memory for tpu_custom_call.1']
    #allocation7 [shape = 'u8[16384]{0}', space=vmem, size = 0x4000, scoped, tag = 'input window, operand 1']
    #allocation8 [shape = 's32[2]{0}', space=sflag, size = 0x8, scoped, tag = 'scoped memory for tpu_custom_call.1']
    #allocation9 [shape = 'u8[4096]{0}', space=vmem, size = 0x1000, scoped, tag = 'input window, operand 5, single buffered']
    #allocation10 [shape = 'u8[16384]{0}', space=vmem, size = 0x4000, scoped, tag = 'output window, operand 0']
    %12 = vsyncpa [#allocation5], 0
    %s13 = scalar_lea.sflag [#allocation5], 1
    %14 = vsyncpa %s13, 0
    %15 = vsyncpa [#allocation8], 0
    %s16 = scalar_lea.sflag [#allocation8], 1
    %17 = vsyncpa %s16, 0
    %18 = vsyncpa [#allocation6], 0
    %s19 = scalar_lea.sflag [#allocation6], 1
    %20 = vsyncpa %s19, 0
    loop: start=0, step=1, limit=4
    $region2: #{tpu_custom_call.1} parent=1 // loop_pre_header
      _
    $region3: #{tpu_custom_call.1} parent=1 // loop_header
      %s22 = sphi 0, %s26
      %p23 = scmp.ge.s32.totalorder %s22, 4
      %s29 = sphi 0, %s41
      %s30 = sphi 0, %s37
      %s31 = sphi 0, %s29
      %s32 = sphi 0, %s30
      %s33 = sphi 0, %s31
      %s34 = sphi 0, %s32
      %s46 = sphi 0, %s48
      %s49 = sphi 0, %s46
      %s50 = sphi 0, %s49
      %s66 = sphi 0, %s50
      %s74 = sphi 0, %s76
      %s77 = sphi 0, %s74
      %s78 = sphi 0, %s77
      %s94 = sphi 0, %s78
      %s98 = sphi 0, %s98
      %s100 = sphi 0, %s98
      %s101 = sphi 0, %s100
      %s115 = sphi 0, %s101
      %s119 = sphi 0, %s119
      %s121 = sphi 0, %s119
      %s122 = sphi 0, %s121
      %s136 = sphi 0, %s122
      %s140 = sphi 0, %s140
      %s142 = sphi 0, %s140
      %s143 = sphi 0, %s142
      %s157 = sphi 0, %s143
      %s161 = sphi 0, %s161
      %s163 = sphi 0, %s161
      %s164 = sphi 0, %s163
      %s178 = sphi 0, %s164
      %s182 = sphi 0, %s182
      %s184 = sphi 0, %s182
      %s185 = sphi 0, %s184
      %s199 = sphi 0, %s185
      %s205 = sphi 0, %s207
      %s208 = sphi 0, %s205
      %s209 = sphi 0, %s208
      %s225 = sphi 0, %s209
    $region4: #{tpu_custom_call.1} parent=1 // loop_header_branch
      %25 = sbr.rel (%p23) target = $region8
    $region5: #{tpu_custom_call.1} parent=1 // loop_body
      %s27 = ssub.s32 %s22, 1
      %s28 = ssub.s32 %s22, 2
      %s35 = sadd.s32 1, %s30
      %p36 = scmp.ge.s32.totalorder %s35, 1
      %s37 = scalar_select %p36, 0, %s35
      %s38 = sadd.s32 1, %s29
      %s39 = scalar_select %p36, %s38, %s29
      %p40 = scmp.ge.s32.totalorder %s39, 2
      %s41 = scalar_select %p40, 0, %s39
      %s42 = ssub.s32 %s29, %s41
      %s43 = ssub.s32 %s30, %s37
      %s44 = sor.u32 %s42, %s43
      %p45 = scmp.eq.s32.totalorder %s44, 0
      %s47 = sadd.s32 %s46, 1
      %s48 = scalar_select %p45, %s46, %s47
      %p51 = pneg %p45
      %p52 = scmp.eq.s32.totalorder %s22, 1
      %p53 = por %p51, %p52
      %p54 = scmp.ne.s32.totalorder %s46, %s49
      %p55 = scmp.eq.s32.totalorder %s22, 0
      %p56 = por %p54, %p55
      %p57 = scmp.ne.s32.totalorder %s46, %s49
      %p58 = scmp.eq.s32.totalorder %s27, 1
      %p59 = por %p57, %p58
      %p60 = scmp.ne.s32.totalorder %s49, %s50
      %p61 = scmp.eq.s32.totalorder %s27, 0
      %p62 = por %p60, %p61
      %p63 = scmp.ne.s32.totalorder %s49, %s50
      %p64 = scmp.eq.s32.totalorder %s28, 1
      %p65 = por %p63, %p64
      %p67 = scmp.ne.s32.totalorder %s50, %s66
      %p68 = scmp.eq.s32.totalorder %s28, 0
      %p69 = por %p67, %p68
      %s70 = ssub.s32 %s29, %s41
      %s71 = ssub.s32 %s30, %s37
      %s72 = sor.u32 %s70, %s71
      %p73 = scmp.eq.s32.totalorder %s72, 0
      %s75 = sadd.s32 %s74, 1
      %s76 = scalar_select %p73, %s74, %s75
      %p79 = pneg %p73
      %p80 = scmp.eq.s32.totalorder %s22, 1
      %p81 = por %p79, %p80
      %p82 = scmp.ne.s32.totalorder %s74, %s77
      %p83 = scmp.eq.s32.totalorder %s22, 0
      %p84 = por %p82, %p83
      %p85 = scmp.ne.s32.totalorder %s74, %s77
      %p86 = scmp.eq.s32.totalorder %s27, 1
      %p87 = por %p85, %p86
      %p88 = scmp.ne.s32.totalorder %s77, %s78
      %p89 = scmp.eq.s32.totalorder %s27, 0
      %p90 = por %p88, %p89
      %p91 = scmp.ne.s32.totalorder %s77, %s78
      %p92 = scmp.eq.s32.totalorder %s28, 1
      %p93 = por %p91, %p92
      %p95 = scmp.ne.s32.totalorder %s78, %s94
      %p96 = scmp.eq.s32.totalorder %s28, 0
      %p97 = por %p95, %p96
      %s99 = sadd.s32 %s98, 1
      %p102 = scmp.eq.s32.totalorder %s22, 1
      %p103 = scmp.ne.s32.totalorder %s98, %s100
      %p104 = scmp.eq.s32.totalorder %s22, 0
      %p105 = por %p103, %p104
      %p106 = scmp.ne.s32.totalorder %s98, %s100
      %p107 = scmp.eq.s32.totalorder %s27, 1
      %p108 = por %p106, %p107
      %p109 = scmp.ne.s32.totalorder %s100, %s101
      %p110 = scmp.eq.s32.totalorder %s27, 0
      %p111 = por %p109, %p110
      %p112 = scmp.ne.s32.totalorder %s100, %s101
      %p113 = scmp.eq.s32.totalorder %s28, 1
      %p114 = por %p112, %p113
      %p116 = scmp.ne.s32.totalorder %s101, %s115
      %p117 = scmp.eq.s32.totalorder %s28, 0
      %p118 = por %p116, %p117
      %s120 = sadd.s32 %s119, 1
      %p123 = scmp.eq.s32.totalorder %s22, 1
      %p124 = scmp.ne.s32.totalorder %s119, %s121
      %p125 = scmp.eq.s32.totalorder %s22, 0
      %p126 = por %p124, %p125
      %p127 = scmp.ne.s32.totalorder %s119, %s121
      %p128 = scmp.eq.s32.totalorder %s27, 1
      %p129 = por %p127, %p128
      %p130 = scmp.ne.s32.totalorder %s121, %s122
      %p131 = scmp.eq.s32.totalorder %s27, 0
      %p132 = por %p130, %p131
      %p133 = scmp.ne.s32.totalorder %s121, %s122
      %p134 = scmp.eq.s32.totalorder %s28, 1
      %p135 = por %p133, %p134
      %p137 = scmp.ne.s32.totalorder %s122, %s136
      %p138 = scmp.eq.s32.totalorder %s28, 0
      %p139 = por %p137, %p138
      %s141 = sadd.s32 %s140, 1
      %p144 = scmp.eq.s32.totalorder %s22, 1
      %p145 = scmp.ne.s32.totalorder %s140, %s142
      %p146 = scmp.eq.s32.totalorder %s22, 0
      %p147 = por %p145, %p146
      %p148 = scmp.ne.s32.totalorder %s140, %s142
      %p149 = scmp.eq.s32.totalorder %s27, 1
      %p150 = por %p148, %p149
      %p151 = scmp.ne.s32.totalorder %s142, %s143
      %p152 = scmp.eq.s32.totalorder %s27, 0
      %p153 = por %p151, %p152
      %p154 = scmp.ne.s32.totalorder %s142, %s143
      %p155 = scmp.eq.s32.totalorder %s28, 1
      %p156 = por %p154, %p155
      %p158 = scmp.ne.s32.totalorder %s143, %s157
      %p159 = scmp.eq.s32.totalorder %s28, 0
      %p160 = por %p158, %p159
      %s162 = sadd.s32 %s161, 1
      %p165 = scmp.eq.s32.totalorder %s22, 1
      %p166 = scmp.ne.s32.totalorder %s161, %s163
      %p167 = scmp.eq.s32.totalorder %s22, 0
      %p168 = por %p166, %p167
      %p169 = scmp.ne.s32.totalorder %s161, %s163
      %p170 = scmp.eq.s32.totalorder %s27, 1
      %p171 = por %p169, %p170
      %p172 = scmp.ne.s32.totalorder %s163, %s164
      %p173 = scmp.eq.s32.totalorder %s27, 0
      %p174 = por %p172, %p173
      %p175 = scmp.ne.s32.totalorder %s163, %s164
      %p176 = scmp.eq.s32.totalorder %s28, 1
      %p177 = por %p175, %p176
      %p179 = scmp.ne.s32.totalorder %s164, %s178
      %p180 = scmp.eq.s32.totalorder %s28, 0
      %p181 = por %p179, %p180
      %s183 = sadd.s32 %s182, 1
      %p186 = scmp.eq.s32.totalorder %s22, 1
      %p187 = scmp.ne.s32.totalorder %s182, %s184
      %p188 = scmp.eq.s32.totalorder %s22, 0
      %p189 = por %p187, %p188
      %p190 = scmp.ne.s32.totalorder %s182, %s184
      %p191 = scmp.eq.s32.totalorder %s27, 1
      %p192 = por %p190, %p191
      %p193 = scmp.ne.s32.totalorder %s184, %s185
      %p194 = scmp.eq.s32.totalorder %s27, 0
      %p195 = por %p193, %p194
      %p196 = scmp.ne.s32.totalorder %s184, %s185
      %p197 = scmp.eq.s32.totalorder %s28, 1
      %p198 = por %p196, %p197
      %p200 = scmp.ne.s32.totalorder %s185, %s199
      %p201 = scmp.eq.s32.totalorder %s28, 0
      %p202 = por %p200, %p201
      %s203 = ssub.s32 %s29, %s41
      %p204 = scmp.eq.s32.totalorder %s203, 0
      %s206 = sadd.s32 %s205, 1
      %s207 = scalar_select %p204, %s205, %s206
      %p210 = pneg %p204
      %p211 = scmp.eq.s32.totalorder %s22, 1
      %p212 = por %p210, %p211
      %p213 = scmp.ne.s32.totalorder %s205, %s208
      %p214 = scmp.eq.s32.totalorder %s22, 0
      %p215 = por %p213, %p214
      %p216 = scmp.ne.s32.totalorder %s205, %s208
      %p217 = scmp.eq.s32.totalorder %s27, 1
      %p218 = por %p216, %p217
      %p219 = scmp.ne.s32.totalorder %s208, %s209
      %p220 = scmp.eq.s32.totalorder %s27, 0
      %p221 = por %p219, %p220
      %p222 = scmp.ne.s32.totalorder %s208, %s209
      %p223 = scmp.eq.s32.totalorder %s28, 1
      %p224 = por %p222, %p223
      %p226 = scmp.ne.s32.totalorder %s209, %s225
      %p227 = scmp.eq.s32.totalorder %s28, 0
      %p228 = por %p226, %p227
      %p229 = scmp.le.s32.totalorder 1, %s22
      %p230 = scmp.lt.s32.totalorder %s22, 3
      %p231 = pnand %p229, %p230
      %p232 = pneg %p231
      // Predicated region
      $region9: #{tpu_custom_call.1} parent=5 // pred_check
        _
      $region10: #{tpu_custom_call.1} parent=5 // pred_check_branch
        %234 = sbr.rel (%p231) target = $region12
      $region11: #{tpu_custom_call.1} parent=5 // pred_region
        %s235 = ssub.s32 %s22, 1
        // Predicated region
        $region13: #{tpu_custom_call.1} parent=11 // pred_check
          %p236 = pneg %p111
        $region14: #{tpu_custom_call.1} parent=11 // pred_check_branch
          %238 = sbr.rel (%p236) target = $region16
        $region15: #{tpu_custom_call.1} parent=11 // pred_region
          _
        $region16: #{tpu_custom_call.1} parent=11 // pred_fallthru
          _
        // Predicated region
        $region17: #{tpu_custom_call.1} parent=11 // pred_check
          %p239 = pneg %p132
        $region18: #{tpu_custom_call.1} parent=11 // pred_check_branch
          %241 = sbr.rel (%p239) target = $region20
        $region19: #{tpu_custom_call.1} parent=11 // pred_region
          _
        $region20: #{tpu_custom_call.1} parent=11 // pred_fallthru
          _
        // Predicated region
        $region21: #{tpu_custom_call.1} parent=11 // pred_check
          %p242 = pneg %p153
        $region22: #{tpu_custom_call.1} parent=11 // pred_check_branch
          %244 = sbr.rel (%p242) target = $region24
        $region23: #{tpu_custom_call.1} parent=11 // pred_region
          _
        $region24: #{tpu_custom_call.1} parent=11 // pred_fallthru
          _
        // Predicated region
        $region25: #{tpu_custom_call.1} parent=11 // pred_check
          %p245 = pneg %p174
        $region26: #{tpu_custom_call.1} parent=11 // pred_check_branch
          %247 = sbr.rel (%p245) target = $region28
        $region27: #{tpu_custom_call.1} parent=11 // pred_region
          %s249 = ssub.s32 128, 128
          %250 = vsyncadd [#allocation8], %s249
          %s252 = sshll.u32 [#allocation9], 4
          %s253 = int_to_ptr.vmem [resolvable:$true] %s252
          %255 = dma.hbm_to_vmem [thread:$0]  %s5, 128, %s253, [#allocation8]
        $region28: #{tpu_custom_call.1} parent=11 // pred_fallthru
          _
        // Predicated region
        $region29: #{tpu_custom_call.1} parent=11 // pred_check
          %p256 = pneg %p195
        $region30: #{tpu_custom_call.1} parent=11 // pred_check_branch
          %258 = sbr.rel (%p256) target = $region32
        $region31: #{tpu_custom_call.1} parent=11 // pred_region
          _
        $region32: #{tpu_custom_call.1} parent=11 // pred_fallthru
          _
      $region12: #{tpu_custom_call.1} parent=5 // pred_fallthru
        _
      %p259 = scmp.lt.s32.totalorder %s22, 2
      // Predicated region
      $region33: #{tpu_custom_call.1} parent=5 // pred_check
        %p260 = pneg %p259
      $region34: #{tpu_custom_call.1} parent=5 // pred_check_branch
        %262 = sbr.rel (%p260) target = $region36
      $region35: #{tpu_custom_call.1} parent=5 // pred_region
        // Predicated region
        $region37: #{tpu_custom_call.1} parent=35 // pred_check
          %p263 = pneg %p56
        $region38: #{tpu_custom_call.1} parent=35 // pred_check_branch
          %265 = sbr.rel (%p263) target = $region40
        $region39: #{tpu_custom_call.1} parent=35 // pred_region
          %s266 = sand.u32 %s46, 1
          %s267 = scalar_lea.sflag [#allocation5], %s266
          %s268 = sand.u32 %s46, 1
          %s269 = smul.addr %s268, 16
          %s270 = scalar_lea.vmem [#allocation4], %s269
          %s271 = smul.u32 2, %s30
          %s273 = ssub.s32 256, 256
          %274 = vsyncadd %s267, %s273
          %s275 = smul.addr %s29, 2
          %s276 = sadd.s32 %s271, %s275
          %s277 = smul.addr %s276, 128
          %s278 = scalar_lea.hbm %s0, %s277
          %s280 = sshll.u32 %s270, 4
          %s281 = int_to_ptr.vmem [resolvable:$true] %s280
          %283 = dma.hbm_to_vmem [thread:$0]  %s278, 256, %s281, %s267
        $region40: #{tpu_custom_call.1} parent=35 // pred_fallthru
          _
        // Predicated region
        $region41: #{tpu_custom_call.1} parent=35 // pred_check
          %p284 = pneg %p84
        $region42: #{tpu_custom_call.1} parent=35 // pred_check_branch
          %286 = sbr.rel (%p284) target = $region44
        $region43: #{tpu_custom_call.1} parent=35 // pred_region
          %s287 = sand.u32 %s22, 1
          %s288 = scalar_lea.sflag [#allocation8], %s287
          %s289 = sand.u32 %s74, 1
          %s290 = smul.addr %s289, 16
          %s291 = scalar_lea.vmem [#allocation7], %s290
          %s292 = smul.u32 2, %s30
          %s294 = ssub.s32 256, 256
          %295 = vsyncadd %s288, %s294
          %s296 = smul.addr %s29, 2
          %s297 = sadd.s32 %s292, %s296
          %s298 = smul.addr %s297, 128
          %s299 = scalar_lea.hbm %s1, %s298
          %s301 = sshll.u32 %s291, 4
          %s302 = int_to_ptr.vmem [resolvable:$true] %s301
          %304 = dma.hbm_to_vmem [thread:$0]  %s299, 256, %s302, %s288
        $region44: #{tpu_custom_call.1} parent=35 // pred_fallthru
          _
      $region36: #{tpu_custom_call.1} parent=5 // pred_fallthru
        _
      %p305 = scmp.le.s32.totalorder 1, %s22
      %p306 = scmp.lt.s32.totalorder %s22, 3
      %p307 = pnand %p305, %p306
      %p308 = pneg %p307
      // Predicated region
      $region45: #{tpu_custom_call.1} parent=5 // pred_check
        _
      $region46: #{tpu_custom_call.1} parent=5 // pred_check_branch
        %310 = sbr.rel (%p307) target = $region48
      $region47: #{tpu_custom_call.1} parent=5 // pred_region
        %s311 = ssub.s32 %s22, 1
        %s312 = sand.u32 %s49, 1
        %s313 = scalar_lea.sflag [#allocation5], %s312
        %s314 = sand.u32 %s49, 1
        %s315 = smul.addr %s314, 16
        %s316 = scalar_lea.vmem [#allocation4], %s315
        // Predicated region
        $region49: #{tpu_custom_call.1} parent=47 // pred_check
          %p317 = pneg %p62
        $region50: #{tpu_custom_call.1} parent=47 // pred_check_branch
          %319 = sbr.rel (%p317) target = $region52
        $region51: #{tpu_custom_call.1} parent=47 // pred_region
          %320 = dma.done %s313, 256
        $region52: #{tpu_custom_call.1} parent=47 // pred_fallthru
          _
        %s321 = sand.u32 %s27, 1
        %s322 = scalar_lea.sflag [#allocation8], %s321
        %s323 = sand.u32 %s77, 1
        %s324 = smul.addr %s323, 16
        %s325 = scalar_lea.vmem [#allocation7], %s324
        // Predicated region
        $region53: #{tpu_custom_call.1} parent=47 // pred_check
          %p326 = pneg %p90
        $region54: #{tpu_custom_call.1} parent=47 // pred_check_branch
          %328 = sbr.rel (%p326) target = $region56
        $region55: #{tpu_custom_call.1} parent=47 // pred_region
          %329 = dma.done %s322, 256
        $region56: #{tpu_custom_call.1} parent=47 // pred_fallthru
          _
        // Predicated region
        $region57: #{tpu_custom_call.1} parent=47 // pred_check
          %p330 = pneg %p174
        $region58: #{tpu_custom_call.1} parent=47 // pred_check_branch
          %332 = sbr.rel (%p330) target = $region60
        $region59: #{tpu_custom_call.1} parent=47 // pred_region
          %333 = dma.done [#allocation8], 128
        $region60: #{tpu_custom_call.1} parent=47 // pred_fallthru
          _
        %s334 = sand.u32 %s49, 1
        %s335 = scalar_lea.sflag [#allocation5], %s334
        %s336 = sand.u32 %s49, 1
        %s337 = smul.addr %s336, 16
        %s338 = scalar_lea.vmem [#allocation4], %s337
        %p339 = pneg %p62
        %p340 = pneg %p59
        %s341 = sand.u32 %s27, 1
        %s342 = scalar_lea.sflag [#allocation8], %s341
        %s343 = sand.u32 %s77, 1
        %s344 = smul.addr %s343, 16
        %s345 = scalar_lea.vmem [#allocation7], %s344
        %p346 = pneg %p90
        %p347 = pneg %p87
        %p348 = pneg %p111
        %p349 = pneg %p108
        %p350 = pneg %p132
        %p351 = pneg %p129
        %p352 = pneg %p153
        %p353 = pneg %p150
        %p354 = pneg %p174
        %p355 = pneg %p171
        %p356 = pneg %p195
        %p357 = pneg %p192
        %p358 = pneg %p221
        %p359 = pneg %p218
        %s360 = sand.u32 %s208, 1
        %s361 = scalar_lea.sflag [#allocation6], %s360
        %s362 = sand.u32 %s208, 1
        %s363 = smul.addr %s362, 16
        %s364 = scalar_lea.vmem [#allocation10], %s363
        %s365 = smul.u32 2, %s32
        %s366 = smul.u32 2, %s32
        %p367 = scmp.eq.s32.totalorder %s32, 0
        // Predicated region
        $region61: #{tpu_custom_call.1} parent=47 // pred_check
          %p368 = pneg %p367
        $region62: #{tpu_custom_call.1} parent=47 // pred_check_branch
          %370 = sbr.rel (%p368) target = $region64
        $region63: #{tpu_custom_call.1} parent=47 // pred_region
          %vm371 = vcmask 7168
          %372 = vst.msk [vmem:[#allocation2] sm:$0xff] %vm371, 0.0
          %373 = vst.msk [vmem:[#allocation3] sm:$0xff] %vm371, 0.0
        $region64: #{tpu_custom_call.1} parent=47 // pred_fallthru
          _
        %v374 = vld [vmem:[%s316] sm:$0xff]
        %v375 = vld [vmem:[%s316 + $0x8] sm:$0xff]
        %v376 = vld [vmem:[%s325] sm:$0xff]
        %v377 = vld [vmem:[%s325 + $0x8] sm:$0xff]
        %v378 = vld [vmem:[#allocation2] sm:$0xff]
        %379 = vmatprep.subr.mxu0 0.0
        %380 = vmatpush1.msra.mxu0 1.0
        %381 = vmatprep.subr.mxu0 0.0
        %382 = vmatpush1.msra.mxu0 1.0
        %383 = vmatprep.subr.mxu0 0.0
        %384 = vmatpush1.msra.mxu0 1.0
        %385 = vmatprep.subr.mxu0 0.0
        %386 = vmatpush1.msra.mxu0 1.0
        %387 = vmatprep.subr.mxu0 0.0
        %388 = vmatpush1.msra.mxu0 1.0
        %389 = vmatprep.subr.mxu0 0.0
        %390 = vmatpush1.msra.mxu0 1.0
        %391 = vmatprep.subr.mxu0 0.0
        %392 = vmatpush1.msra.mxu0 1.0
        %393 = vmatprep.subr.mxu0 0.0
        %394 = vmatpush1.msra.mxu0 1.0
        %395 = vmatprep.subr.mxu0 0.0
        %396 = vmatpush1.msra.mxu0 1.0
        %397 = vmatprep.subr.mxu0 0.0
        %398 = vmatpush1.msra.mxu0 1.0
        %399 = vmatprep.subr.mxu0 0.0
        %400 = vmatpush1.msra.mxu0 1.0
        %401 = vmatprep.subr.mxu0 0.0
        %402 = vmatpush1.msra.mxu0 1.0
        %403 = vmatprep.subr.mxu0 0.0
        %404 = vmatpush1.msra.mxu0 1.0
        %405 = vmatprep.subr.mxu0 0.0
        %406 = vmatpush1.msra.mxu0 1.0
        %407 = vmatprep.subr.mxu0 0.0
        %408 = vmatpush1.msra.mxu0 1.0
        %409 = vmatprep.subr.mxu0 0.0
        %410 = vmatpush1.msra.mxu0 1.0
        %411 = vmatprep.subr.mxu0 0.0
        %412 = vmatpush1.msra.mxu0 1.0
        %413 = vmatprep.subr.mxu0 0.0
        %414 = vmatpush1.msra.mxu0 1.0
        %415 = vmatprep.subr.mxu0 0.0
        %416 = vmatpush1.msra.mxu0 1.0
        %417 = vmatprep.subr.mxu0 0.0
        %418 = vmatpush1.msra.mxu0 1.0
        %419 = vmatprep.subr.mxu0 0.0
        %420 = vmatpush1.msra.mxu0 1.0
        %421 = vmatprep.subr.mxu0 0.0
        %422 = vmatpush1.msra.mxu0 1.0
        %423 = vmatprep.subr.mxu0 0.0
        %424 = vmatpush1.msra.mxu0 1.0
        %425 = vmatprep.subr.mxu0 0.0
        %426 = vmatpush1.msra.mxu0 1.0
        %427 = vmatprep.subr.mxu0 0.0
        %428 = vmatpush1.msra.mxu0 1.0
        %429 = vmatprep.subr.mxu0 0.0
        %430 = vmatpush1.msra.mxu0 1.0
        %431 = vmatprep.subr.mxu0 0.0
        %432 = vmatpush1.msra.mxu0 1.0
        %433 = vmatprep.subr.mxu0 0.0
        %434 = vmatpush1.msra.mxu0 1.0
        %435 = vmatprep.subr.mxu0 0.0
        %436 = vmatpush1.msra.mxu0 1.0
        %437 = vmatprep.subr.mxu0 0.0
        %438 = vmatpush1.msra.mxu0 1.0
        %439 = vmatprep.subr.mxu0 0.0
        %440 = vmatpush1.msra.mxu0 1.0
        %441 = vmatprep.subr.mxu0 0.0
        %442 = vmatpush1.msra.mxu0 1.0
        %443 = vmatprep.mubr.f32.mxu0 %v375
        %444 = vmatmul.mubr.f32.gmra.mrb[0].mxu0 %v374
        %v445 = vpop.f32.mrb[0].mxu0
        %v446 = vadd.f32 0.0, %v445
        %v447 = vpop.f32.mrb[0].mxu0
        %448 = vdwg.mxu0
        %v449 = vadd.f32 %v378, %v446
        %vm450 = vcmask 7168
        %451 = vst.msk [vmem:[#allocation2] sm:$0xff] %vm450, %v449
        %v452 = vld [vmem:[#allocation3] sm:$0xff]
        %453 = vmatprep.subr.mxu0 0.0
        %454 = vmatpush1.msra.mxu0 1.0
        %455 = vmatprep.subr.mxu0 0.0
        %456 = vmatpush1.msra.mxu0 1.0
        %457 = vmatprep.subr.mxu0 0.0
        %458 = vmatpush1.msra.mxu0 1.0
        %459 = vmatprep.subr.mxu0 0.0
        %460 = vmatpush1.msra.mxu0 1.0
        %461 = vmatprep.subr.mxu0 0.0
        %462 = vmatpush1.msra.mxu0 1.0
        %463 = vmatprep.subr.mxu0 0.0
        %464 = vmatpush1.msra.mxu0 1.0
        %465 = vmatprep.subr.mxu0 0.0
        %466 = vmatpush1.msra.mxu0 1.0
        %467 = vmatprep.subr.mxu0 0.0
        %468 = vmatpush1.msra.mxu0 1.0
        %469 = vmatprep.subr.mxu0 0.0
        %470 = vmatpush1.msra.mxu0 1.0
        %471 = vmatprep.subr.mxu0 0.0
        %472 = vmatpush1.msra.mxu0 1.0
        %473 = vmatprep.subr.mxu0 0.0
        %474 = vmatpush1.msra.mxu0 1.0
        %475 = vmatprep.subr.mxu0 0.0
        %476 = vmatpush1.msra.mxu0 1.0
        %477 = vmatprep.subr.mxu0 0.0
        %478 = vmatpush1.msra.mxu0 1.0
        %479 = vmatprep.subr.mxu0 0.0
        %480 = vmatpush1.msra.mxu0 1.0
        %481 = vmatprep.subr.mxu0 0.0
        %482 = vmatpush1.msra.mxu0 1.0
        %483 = vmatprep.subr.mxu0 0.0
        %484 = vmatpush1.msra.mxu0 1.0
        %485 = vmatprep.subr.mxu0 0.0
        %486 = vmatpush1.msra.mxu0 1.0
        %487 = vmatprep.subr.mxu0 0.0
        %488 = vmatpush1.msra.mxu0 1.0
        %489 = vmatprep.subr.mxu0 0.0
        %490 = vmatpush1.msra.mxu0 1.0
        %491 = vmatprep.subr.mxu0 0.0
        %492 = vmatpush1.msra.mxu0 1.0
        %493 = vmatprep.subr.mxu0 0.0
        %494 = vmatpush1.msra.mxu0 1.0
        %495 = vmatprep.subr.mxu0 0.0
        %496 = vmatpush1.msra.mxu0 1.0
        %497 = vmatprep.subr.mxu0 0.0
        %498 = vmatpush1.msra.mxu0 1.0
        %499 = vmatprep.subr.mxu0 0.0
        %500 = vmatpush1.msra.mxu0 1.0
        %501 = vmatprep.subr.mxu0 0.0
        %502 = vmatpush1.msra.mxu0 1.0
        %503 = vmatprep.subr.mxu0 0.0
        %504 = vmatpush1.msra.mxu0 1.0
        %505 = vmatprep.subr.mxu0 0.0
        %506 = vmatpush1.msra.mxu0 1.0
        %507 = vmatprep.subr.mxu0 0.0
        %508 = vmatpush1.msra.mxu0 1.0
        %509 = vmatprep.subr.mxu0 0.0
        %510 = vmatpush1.msra.mxu0 1.0
        %511 = vmatprep.subr.mxu0 0.0
        %512 = vmatpush1.msra.mxu0 1.0
        %513 = vmatprep.subr.mxu0 0.0
        %514 = vmatpush1.msra.mxu0 1.0
        %515 = vmatprep.subr.mxu0 0.0
        %516 = vmatpush1.msra.mxu0 1.0
        %517 = vmatprep.mubr.f32.mxu0 %v377
        %518 = vmatmul.mubr.f32.gmra.mrb[0].mxu0 %v376
        %v519 = vpop.f32.mrb[0].mxu0
        %v520 = vadd.f32 0.0, %v519
        %v521 = vpop.f32.mrb[0].mxu0
        %522 = vdwg.mxu0
        %v523 = vadd.f32 %v452, %v520
        %524 = vst.msk [vmem:[#allocation3] sm:$0xff] %vm450, %v523
        %v525 = vld [vmem:[%s2] sm:$0xff]
        %v526 = vld [vmem:[%s3] sm:$0xff]
        %vm527 = vcmask 64512
        %v529 = vsel %vm527, %v526, 0
        %531 = vmatprep.subr.mxu0 %v377
        %532 = vmatpush1.msra.mxu0 %v376
        %533 = vmatprep.subr.mxu0 0.0
        %534 = vmatpush1.msra.mxu0 0.0
        %535 = vmatprep.subr.mxu0 0.0
        %536 = vmatpush1.msra.mxu0 0.0
        %537 = vmatprep.subr.mxu0 0.0
        %538 = vmatpush1.msra.mxu0 0.0
        %539 = vmatprep.subr.mxu0 0.0
        %540 = vmatpush1.msra.mxu0 0.0
        %541 = vmatprep.subr.mxu0 0.0
        %542 = vmatpush1.msra.mxu0 0.0
        %543 = vmatprep.subr.mxu0 0.0
        %544 = vmatpush1.msra.mxu0 0.0
        %545 = vmatprep.subr.mxu0 0.0
        %546 = vmatpush1.msra.mxu0 0.0
        %547 = vmatprep.subr.mxu0 0.0
        %548 = vmatpush1.msra.mxu0 0.0
        %549 = vmatprep.subr.mxu0 0.0
        %550 = vmatpush1.msra.mxu0 0.0
        %551 = vmatprep.subr.mxu0 0.0
        %552 = vmatpush1.msra.mxu0 0.0
        %553 = vmatprep.subr.mxu0 0.0
        %554 = vmatpush1.msra.mxu0 0.0
        %555 = vmatprep.subr.mxu0 0.0
        %556 = vmatpush1.msra.mxu0 0.0
        %557 = vmatprep.subr.mxu0 0.0
        %558 = vmatpush1.msra.mxu0 0.0
        %559 = vmatprep.subr.mxu0 0.0
        %560 = vmatpush1.msra.mxu0 0.0
        %561 = vmatprep.subr.mxu0 0.0
        %562 = vmatpush1.msra.mxu0 0.0
        %563 = vmatprep.subr.mxu0 0.0
        %564 = vmatpush1.msra.mxu0 0.0
        %565 = vmatprep.subr.mxu0 0.0
        %566 = vmatpush1.msra.mxu0 0.0
        %567 = vmatprep.subr.mxu0 0.0
        %568 = vmatpush1.msra.mxu0 0.0
        %569 = vmatprep.subr.mxu0 0.0
        %570 = vmatpush1.msra.mxu0 0.0
        %571 = vmatprep.subr.mxu0 0.0
        %572 = vmatpush1.msra.mxu0 0.0
        %573 = vmatprep.subr.mxu0 0.0
        %574 = vmatpush1.msra.mxu0 0.0
        %575 = vmatprep.subr.mxu0 0.0
        %576 = vmatpush1.msra.mxu0 0.0
        %577 = vmatprep.subr.mxu0 0.0
        %578 = vmatpush1.msra.mxu0 0.0
        %579 = vmatprep.subr.mxu0 0.0
        %580 = vmatpush1.msra.mxu0 0.0
        %581 = vmatprep.subr.mxu0 0.0
        %582 = vmatpush1.msra.mxu0 0.0
        %583 = vmatprep.subr.mxu0 0.0
        %584 = vmatpush1.msra.mxu0 0.0
        %585 = vmatprep.subr.mxu0 0.0
        %586 = vmatpush1.msra.mxu0 0.0
        %587 = vmatprep.subr.mxu0 0.0
        %588 = vmatpush1.msra.mxu0 0.0
        %589 = vmatprep.subr.mxu0 0.0
        %590 = vmatpush1.msra.mxu0 0.0
        %591 = vmatprep.subr.mxu0 0.0
        %592 = vmatpush1.msra.mxu0 0.0
        %593 = vmatprep.subr.mxu0 0.0
        %594 = vmatpush1.msra.mxu0 0.0
        %595 = vmatprep.mubr.f32.mxu0 0.0
        %596 = vmatmul.mubr.f32.gmra.mrb[0].mxu0 %v529
        %v597 = vpop.f32.mrb[0].mxu0
        %v598 = vadd.f32 0.0, %v597
        %v599 = vpop.f32.mrb[0].mxu0
        %v600 = vadd.f32 0.0, %v599
        %601 = vdwg.mxu0
        %v603 = vsel %vm527, %v525, 0
        %605 = vmatprep.subr.mxu0 %v375
        %606 = vmatpush1.msra.mxu0 %v374
        %607 = vmatprep.subr.mxu0 0.0
        %608 = vmatpush1.msra.mxu0 0.0
        %609 = vmatprep.subr.mxu0 0.0
        %610 = vmatpush1.msra.mxu0 0.0
        %611 = vmatprep.subr.mxu0 0.0
        %612 = vmatpush1.msra.mxu0 0.0
        %613 = vmatprep.subr.mxu0 0.0
        %614 = vmatpush1.msra.mxu0 0.0
        %615 = vmatprep.subr.mxu0 0.0
        %616 = vmatpush1.msra.mxu0 0.0
        %617 = vmatprep.subr.mxu0 0.0
        %618 = vmatpush1.msra.mxu0 0.0
        %619 = vmatprep.subr.mxu0 0.0
        %620 = vmatpush1.msra.mxu0 0.0
        %621 = vmatprep.subr.mxu0 0.0
        %622 = vmatpush1.msra.mxu0 0.0
        %623 = vmatprep.subr.mxu0 0.0
        %624 = vmatpush1.msra.mxu0 0.0
        %625 = vmatprep.subr.mxu0 0.0
        %626 = vmatpush1.msra.mxu0 0.0
        %627 = vmatprep.subr.mxu0 0.0
        %628 = vmatpush1.msra.mxu0 0.0
        %629 = vmatprep.subr.mxu0 0.0
        %630 = vmatpush1.msra.mxu0 0.0
        %631 = vmatprep.subr.mxu0 0.0
        %632 = vmatpush1.msra.mxu0 0.0
        %633 = vmatprep.subr.mxu0 0.0
        %634 = vmatpush1.msra.mxu0 0.0
        %635 = vmatprep.subr.mxu0 0.0
        %636 = vmatpush1.msra.mxu0 0.0
        %637 = vmatprep.subr.mxu0 0.0
        %638 = vmatpush1.msra.mxu0 0.0
        %639 = vmatprep.subr.mxu0 0.0
        %640 = vmatpush1.msra.mxu0 0.0
        %641 = vmatprep.subr.mxu0 0.0
        %642 = vmatpush1.msra.mxu0 0.0
        %643 = vmatprep.subr.mxu0 0.0
        %644 = vmatpush1.msra.mxu0 0.0
        %645 = vmatprep.subr.mxu0 0.0
        %646 = vmatpush1.msra.mxu0 0.0
        %647 = vmatprep.subr.mxu0 0.0
        %648 = vmatpush1.msra.mxu0 0.0
        %649 = vmatprep.subr.mxu0 0.0
        %650 = vmatpush1.msra.mxu0 0.0
        %651 = vmatprep.subr.mxu0 0.0
        %652 = vmatpush1.msra.mxu0 0.0
        %653 = vmatprep.subr.mxu0 0.0
        %654 = vmatpush1.msra.mxu0 0.0
        %655 = vmatprep.subr.mxu0 0.0
        %656 = vmatpush1.msra.mxu0 0.0
        %657 = vmatprep.subr.mxu0 0.0
        %658 = vmatpush1.msra.mxu0 0.0
        %659 = vmatprep.subr.mxu0 0.0
        %660 = vmatpush1.msra.mxu0 0.0
        %661 = vmatprep.subr.mxu0 0.0
        %662 = vmatpush1.msra.mxu0 0.0
        %663 = vmatprep.subr.mxu0 0.0
        %664 = vmatpush1.msra.mxu0 0.0
        %665 = vmatprep.subr.mxu0 0.0
        %666 = vmatpush1.msra.mxu0 0.0
        %667 = vmatprep.subr.mxu0 0.0
        %668 = vmatpush1.msra.mxu0 0.0
        %669 = vmatprep.mubr.f32.mxu0 0.0
        %670 = vmatmul.mubr.f32.gmra.mrb[0].mxu0 %v603
        %v671 = vpop.f32.mrb[0].mxu0
        %v672 = vadd.f32 %v598, %v671
        %v673 = vpop.f32.mrb[0].mxu0
        %v674 = vadd.f32 %v600, %v673
        %675 = vdwg.mxu0
        %v676 = vadd.f32 %v672, %v374
        %v677 = vadd.f32 %v674, %v375
        %v678 = vmax.f32 %v676, 0.0
        %v679 = vmax.f32 %v677, 0.0
        %s680 = smul.u32 %s32, 256
        %s681 = sshra.s32 %s680, 7
        %s682 = sand.u32 %s680, 127
        %s683 = smul.addr %s681, 8
        %s684 = scalar_lea.vmem %s364, %s683 [#allocation10]
        %685 = vst [vmem:[%s684] sm:$0xff] %v678
        %686 = vst [vmem:[%s684 + $0x8] sm:$0xff] %v679
        // Predicated region
        $region65: #{tpu_custom_call.1} parent=47 // pred_check
          %p687 = pneg %p367
        $region66: #{tpu_custom_call.1} parent=47 // pred_check_branch
          %689 = sbr.rel (%p687) target = $region68
        $region67: #{tpu_custom_call.1} parent=47 // pred_region
          %v690 = vld [vmem:[#allocation2] sm:$0xff]
          %v691 = vmul.f32 %v690, 0.00390625
          %v692 = vld [vmem:[#allocation3] sm:$0xff]
          %v693 = vmul.f32 %v692, 0.00390625
          %v694 = vld [vmem:[%s4] sm:$0xff]
          %v695 = vld [vmem:[#allocation9] sm:$0xff]
          %v697 = vsel %vm527, %v695, 0
          %699 = vmatprep.subr.mxu0 0.0
          %700 = vmatpush1.msra.mxu0 %v693
          %701 = vmatprep.subr.mxu0 0.0
          %702 = vmatpush1.msra.mxu0 0.0
          %703 = vmatprep.subr.mxu0 0.0
          %704 = vmatpush1.msra.mxu0 0.0
          %705 = vmatprep.subr.mxu0 0.0
          %706 = vmatpush1.msra.mxu0 0.0
          %707 = vmatprep.subr.mxu0 0.0
          %708 = vmatpush1.msra.mxu0 0.0
          %709 = vmatprep.subr.mxu0 0.0
          %710 = vmatpush1.msra.mxu0 0.0
          %711 = vmatprep.subr.mxu0 0.0
          %712 = vmatpush1.msra.mxu0 0.0
          %713 = vmatprep.subr.mxu0 0.0
          %714 = vmatpush1.msra.mxu0 0.0
          %715 = vmatprep.subr.mxu0 0.0
          %716 = vmatpush1.msra.mxu0 0.0
          %717 = vmatprep.subr.mxu0 0.0
          %718 = vmatpush1.msra.mxu0 0.0
          %719 = vmatprep.subr.mxu0 0.0
          %720 = vmatpush1.msra.mxu0 0.0
          %721 = vmatprep.subr.mxu0 0.0
          %722 = vmatpush1.msra.mxu0 0.0
          %723 = vmatprep.subr.mxu0 0.0
          %724 = vmatpush1.msra.mxu0 0.0
          %725 = vmatprep.subr.mxu0 0.0
          %726 = vmatpush1.msra.mxu0 0.0
          %727 = vmatprep.subr.mxu0 0.0
          %728 = vmatpush1.msra.mxu0 0.0
          %729 = vmatprep.subr.mxu0 0.0
          %730 = vmatpush1.msra.mxu0 0.0
          %731 = vmatprep.subr.mxu0 0.0
          %732 = vmatpush1.msra.mxu0 0.0
          %733 = vmatprep.subr.mxu0 0.0
          %734 = vmatpush1.msra.mxu0 0.0
          %735 = vmatprep.subr.mxu0 0.0
          %736 = vmatpush1.msra.mxu0 0.0
          %737 = vmatprep.subr.mxu0 0.0
          %738 = vmatpush1.msra.mxu0 0.0
          %739 = vmatprep.subr.mxu0 0.0
          %740 = vmatpush1.msra.mxu0 0.0
          %741 = vmatprep.subr.mxu0 0.0
          %742 = vmatpush1.msra.mxu0 0.0
          %743 = vmatprep.subr.mxu0 0.0
          %744 = vmatpush1.msra.mxu0 0.0
          %745 = vmatprep.subr.mxu0 0.0
          %746 = vmatpush1.msra.mxu0 0.0
          %747 = vmatprep.subr.mxu0 0.0
          %748 = vmatpush1.msra.mxu0 0.0
          %749 = vmatprep.subr.mxu0 0.0
          %750 = vmatpush1.msra.mxu0 0.0
          %751 = vmatprep.subr.mxu0 0.0
          %752 = vmatpush1.msra.mxu0 0.0
          %753 = vmatprep.subr.mxu0 0.0
          %754 = vmatpush1.msra.mxu0 0.0
          %755 = vmatprep.subr.mxu0 0.0
          %756 = vmatpush1.msra.mxu0 0.0
          %757 = vmatprep.subr.mxu0 0.0
          %758 = vmatpush1.msra.mxu0 0.0
          %759 = vmatprep.subr.mxu0 0.0
          %760 = vmatpush1.msra.mxu0 0.0
          %761 = vmatprep.subr.mxu0 0.0
          %762 = vmatpush1.msra.mxu0 0.0
          %763 = vmatprep.mubr.f32.mxu0 0.0
          %764 = vmatmul.mubr.f32.gmra.mrb[0].mxu0 %v697
          %v765 = vpop.f32.mrb[0].mxu0
          %v766 = vadd.f32 0.0, %v765
          %v767 = vpop.f32.mrb[0].mxu0
          %768 = vdwg.mxu0
          %v770 = vsel %vm527, %v694, 0
          %772 = vmatprep.subr.mxu0 0.0
          %773 = vmatpush1.msra.mxu0 %v691
          %774 = vmatprep.subr.mxu0 0.0
          %775 = vmatpush1.msra.mxu0 0.0
          %776 = vmatprep.subr.mxu0 0.0
          %777 = vmatpush1.msra.mxu0 0.0
          %778 = vmatprep.subr.mxu0 0.0
          %779 = vmatpush1.msra.mxu0 0.0
          %780 = vmatprep.subr.mxu0 0.0
          %781 = vmatpush1.msra.mxu0 0.0
          %782 = vmatprep.subr.mxu0 0.0
          %783 = vmatpush1.msra.mxu0 0.0
          %784 = vmatprep.subr.mxu0 0.0
          %785 = vmatpush1.msra.mxu0 0.0
          %786 = vmatprep.subr.mxu0 0.0
          %787 = vmatpush1.msra.mxu0 0.0
          %788 = vmatprep.subr.mxu0 0.0
          %789 = vmatpush1.msra.mxu0 0.0
          %790 = vmatprep.subr.mxu0 0.0
          %791 = vmatpush1.msra.mxu0 0.0
          %792 = vmatprep.subr.mxu0 0.0
          %793 = vmatpush1.msra.mxu0 0.0
          %794 = vmatprep.subr.mxu0 0.0
          %795 = vmatpush1.msra.mxu0 0.0
          %796 = vmatprep.subr.mxu0 0.0
          %797 = vmatpush1.msra.mxu0 0.0
          %798 = vmatprep.subr.mxu0 0.0
          %799 = vmatpush1.msra.mxu0 0.0
          %800 = vmatprep.subr.mxu0 0.0
          %801 = vmatpush1.msra.mxu0 0.0
          %802 = vmatprep.subr.mxu0 0.0
          %803 = vmatpush1.msra.mxu0 0.0
          %804 = vmatprep.subr.mxu0 0.0
          %805 = vmatpush1.msra.mxu0 0.0
          %806 = vmatprep.subr.mxu0 0.0
          %807 = vmatpush1.msra.mxu0 0.0
          %808 = vmatprep.subr.mxu0 0.0
          %809 = vmatpush1.msra.mxu0 0.0
          %810 = vmatprep.subr.mxu0 0.0
          %811 = vmatpush1.msra.mxu0 0.0
          %812 = vmatprep.subr.mxu0 0.0
          %813 = vmatpush1.msra.mxu0 0.0
          %814 = vmatprep.subr.mxu0 0.0
          %815 = vmatpush1.msra.mxu0 0.0
          %816 = vmatprep.subr.mxu0 0.0
          %817 = vmatpush1.msra.mxu0 0.0
          %818 = vmatprep.subr.mxu0 0.0
          %819 = vmatpush1.msra.mxu0 0.0
          %820 = vmatprep.subr.mxu0 0.0
          %821 = vmatpush1.msra.mxu0 0.0
          %822 = vmatprep.subr.mxu0 0.0
          %823 = vmatpush1.msra.mxu0 0.0
          %824 = vmatprep.subr.mxu0 0.0
          %825 = vmatpush1.msra.mxu0 0.0
          %826 = vmatprep.subr.mxu0 0.0
          %827 = vmatpush1.msra.mxu0 0.0
          %828 = vmatprep.subr.mxu0 0.0
          %829 = vmatpush1.msra.mxu0 0.0
          %830 = vmatprep.subr.mxu0 0.0
          %831 = vmatpush1.msra.mxu0 0.0
          %832 = vmatprep.subr.mxu0 0.0
          %833 = vmatpush1.msra.mxu0 0.0
          %834 = vmatprep.subr.mxu0 0.0
          %835 = vmatpush1.msra.mxu0 0.0
          %836 = vmatprep.mubr.f32.mxu0 0.0
          %837 = vmatmul.mubr.f32.gmra.mrb[0].mxu0 %v770
          %v838 = vpop.f32.mrb[0].mxu0
          %v839 = vadd.f32 %v766, %v838
          %v840 = vpop.f32.mrb[0].mxu0
          %841 = vdwg.mxu0
          %v842 = vld [vmem:[%s6] sm:$0xff]
          %v843 = vadd.f32 %v839, %v842
          %v844 = vadd.f32 %v843, 1.0
          %v845 = vld [vmem:[%s364] sm:$0xff]
          %v846 = vld [vmem:[%s364 + $0x8] sm:$0xff]
          %848 = vset.pattern.permute.xlu0 0
          %849 = vperm.xlu0 %848, %v844
          %v850 = vpop.permute.xlu0 %849
          %v852 = vmul.f32 %v850, %v845
          %v853 = vmul.f32 %v850, %v846
          %854 = vst [vmem:[%s364] sm:$0xff] %v852
          %855 = vst [vmem:[%s364 + $0x8] sm:$0xff] %v853
        $region68: #{tpu_custom_call.1} parent=47 // pred_fallthru
          _
        %s856 = sand.u32 %s208, 1
        %s857 = scalar_lea.sflag [#allocation6], %s856
        %s858 = sand.u32 %s208, 1
        %s859 = smul.addr %s858, 16
        %s860 = scalar_lea.vmem [#allocation10], %s859
        // Predicated region
        $region69: #{tpu_custom_call.1} parent=47 // pred_check
          %p861 = pneg %p218
        $region70: #{tpu_custom_call.1} parent=47 // pred_check_branch
          %863 = sbr.rel (%p861) target = $region72
        $region71: #{tpu_custom_call.1} parent=47 // pred_region
          %s865 = ssub.s32 256, 256
          %866 = vsyncadd %s857, %s865
          %s867 = smul.addr %s31, 2
          %s868 = smul.addr %s867, 128
          %s869 = scalar_lea.hbm %s7, %s868
          %s871 = sshll.u32 %s860, 4
          %s872 = int_to_ptr.vmem [resolvable:$true] %s871
          %874 = dma.vmem_to_hbm [thread:$0]  %s872, 256, %s869, %s857
        $region72: #{tpu_custom_call.1} parent=47 // pred_fallthru
          _
      $region48: #{tpu_custom_call.1} parent=5 // pred_fallthru
        _
      %p875 = scmp.le.s32.totalorder 2, %s22
      // Predicated region
      $region73: #{tpu_custom_call.1} parent=5 // pred_check
        %p876 = pneg %p875
      $region74: #{tpu_custom_call.1} parent=5 // pred_check_branch
        %878 = sbr.rel (%p876) target = $region76
      $region75: #{tpu_custom_call.1} parent=5 // pred_region
        %s879 = ssub.s32 %s22, 2
        // Predicated region
        $region77: #{tpu_custom_call.1} parent=75 // pred_check
          %p880 = pneg %p224
        $region78: #{tpu_custom_call.1} parent=75 // pred_check_branch
          %882 = sbr.rel (%p880) target = $region80
        $region79: #{tpu_custom_call.1} parent=75 // pred_region
          %s883 = sand.u32 %s209, 1
          %s884 = scalar_lea.sflag [#allocation6], %s883
          %s885 = sand.u32 %s209, 1
          %s886 = smul.addr %s885, 16
          %s887 = scalar_lea.vmem [#allocation10], %s886
          %888 = dma.done %s884, 256
        $region80: #{tpu_custom_call.1} parent=75 // pred_fallthru
          _
      $region76: #{tpu_custom_call.1} parent=5 // pred_fallthru
        _
    $region6: #{tpu_custom_call.1} parent=1 // loop_footer
      %s26 = sadd.s32 1, %s22
    $region7: #{tpu_custom_call.1} parent=1 // loop_footer_branch
      %21 = sbr.rel target = $region3
    $region8: #{tpu_custom_call.1} parent=1 // loop_exit
      _
    %889 = vsyncpa [#allocation5], 1
    %s890 = scalar_lea.sflag [#allocation5], 1
    %891 = vsyncpa %s890, 1
    %892 = vsyncpa [#allocation8], 1
    %s893 = scalar_lea.sflag [#allocation8], 1
    %894 = vsyncpa %s893, 1
    %895 = vsyncpa [#allocation6], 1
    %s896 = scalar_lea.sflag [#allocation6], 1
    %897 = vsyncpa %s896, 1

</llo_original>
